<compile_context>
chip_gen: v5e
topology: v5e:2x2
jax: 0.10.0
libtpu: 0.0.40
codegen_flags: <defaults>
</compile_context>

<pallas_src>
import functools

import jax
import jax.numpy as jnp
from jax import lax
from jax.experimental import pallas as pl
from jax.experimental.pallas import tpu as pltpu


def _spatial_attention_kernel(x_ref, w_ref, o_ref, mx_ref, pf_ref, *,
                              ksize, C, H, W, front):
    """One (batch, channel-tile) grid step.

    x_ref : (1, TC, HW)  VMEM  lane-dense channel tile of the input
    w_ref : (K*K,)       SMEM  flattened conv weight (scalar reads)
    o_ref : (1, 1, HW)   VMEM  lane-dense attention-map output
    mx_ref: (SL, HW)     VMEM  running channel max (input dtype, full vregs)
    pf_ref: (1, L)       VMEM  flat zero-padded max map (f32), row stride W
    """
    K = ksize
    p = (K - 1) // 2
    HW = H * W
    TC = x_ref.shape[1]
    SL = mx_ref.shape[0]

    c = pl.program_id(1)
    nc = pl.num_programs(1)

    # ---------------- hot loop: running channel max ----------------
    @pl.when(c == 0)
    def _():
        mx_ref[...] = jnp.full(mx_ref.shape, -jnp.inf, dtype=mx_ref.dtype)

    x = x_ref[0]                                        # (TC, HW), input dtype

    def _accumulate(xv):
        # Fold TC rows into SL sublane rows: pure element-wise VPU maxes.
        m = mx_ref[...]
        for g in range(TC // SL):
            m = jnp.maximum(m, xv[g * SL:(g + 1) * SL, :])
        mx_ref[...] = m

    if C % TC != 0:
        # Only the last channel tile is partial; keep the mask off the hot path.
        @pl.when(c < nc - 1)
        def _():
            _accumulate(x)

        @pl.when(c == nc - 1)
        def _():
            ch = c * TC + lax.broadcasted_iota(jnp.int32, x.shape, 0)
            _accumulate(jnp.where(ch < C, x, float("-inf")))
    else:
        _accumulate(x)

    # ---------------- epilogue: pad, KxK conv, sigmoid ----------------
    @pl.when(c == nc - 1)
    def _():
        istart = front + p * W          # interior start, multiple of 128 lanes

        # Zero the flat padded map, then drop the reduced max into its interior
        # with a single lane-aligned store (the SL->1 cross-sublane reduce runs
        # exactly once per batch element, here).
        pf_ref[...] = jnp.zeros(pf_ref.shape, pf_ref.dtype)
        m_flat = jnp.max(mx_ref[...], axis=0, keepdims=True).astype(jnp.float32)
        pf_ref[:, istart:istart + HW] = m_flat

        # K row-band loads; the K column shifts per band are in-register lane
        # slices.  One independent accumulator chain per kj.
        partial = [None] * K
        for ki in range(K):
            bstart = front - p + ki * W
            band = pf_ref[:, bstart:bstart + HW + 2 * p]       # (1, HW + 2p)
            for kj in range(K):
                tap = band[:, kj:kj + HW]                       # (1, HW)
                term = w_ref[ki * K + kj] * tap
                partial[kj] = term if partial[kj] is None else partial[kj] + term

        # Column-validity masks: the flat layout wraps columns into the
        # neighbouring row (row padding is already real zeros in pf_ref).
        wcoord = lax.broadcasted_iota(jnp.int32, (1, HW), 1) % W
        for kj in range(K):
            lo, hi = p - kj, W + p - kj
            if lo > 0 or hi < W:
                mask = (wcoord >= lo) & (wcoord < hi)
                partial[kj] = jnp.where(mask, partial[kj], 0.0)

        # Balanced tree sum of the K per-kj partials.
        vals = partial
        while len(vals) > 1:
            nxt = [vals[i] + vals[i + 1] for i in range(0, len(vals) - 1, 2)]
            if len(vals) % 2:
                nxt.append(vals[-1])
            vals = nxt

        o_ref[0] = jax.nn.sigmoid(vals[0]).astype(o_ref.dtype)


def spatial_attention(x, weight, kernel_size=7,
                      block_target_bytes=4 * 1024 * 1024):
    """x: (N, C, H, W); weight: (K, K) -> (N, 1, H, W)."""
    assert kernel_size in (3, 7), "kernel size must be 3 or 7"
    N, C, H, W = x.shape
    K = kernel_size
    p = (K - 1) // 2
    HW = H * W
    assert weight.shape == (K, K)

    # Lane-dense layout for the channel-max stage (contiguous, free reshape).
    x_flat = x.reshape(N, C, HW)
    w_flat = weight.reshape(K * K)

    itemsize = jnp.dtype(x.dtype).itemsize
    # dtype packing granularity on the second-minor (sublane) block dim.
    granule = max(8, 32 // itemsize)

    # ~4 MiB input blocks by default: big enough to amortize the ~0.35 us
    # per-grid-step overhead on v6e/v7x, and fine on v5e with the raised
    # vmem limit below.
    max_tc = max(1, block_target_bytes // (HW * itemsize))
    if max_tc >= C:
        TC = C                                   # single tile (full dim, always legal)
    else:
        TC = max(granule, (max_tc // granule) * granule)
    nc = pl.cdiv(C, TC)

    # Running-max scratch keeps full (sublane, lane) vregs per step.
    SL = granule if TC % granule == 0 else TC

    # Flat padded map: `front` leading zeros so the interior starts lane-aligned,
    # p zero rows top/bottom plus column slack for the shifted taps.
    istart = ((p + p * W + 127) // 128) * 128
    front = istart - p * W                      # >= p by construction
    L = front - p + (K - 1) * W + (K - 1) + HW
    L = ((L + 127) // 128) * 128

    kernel = functools.partial(_spatial_attention_kernel,
                               ksize=K, C=C, H=H, W=W, front=front)

    cost = pl.CostEstimate(
        flops=N * C * HW + 2 * K * K * N * HW,
        transcendentals=N * HW,
        bytes_accessed=N * C * HW * itemsize + N * HW * itemsize + K * K * 4,
    )

    out = pl.pallas_call(
        kernel,
        out_shape=jax.ShapeDtypeStruct((N, 1, HW), x.dtype),
        grid_spec=pltpu.PrefetchScalarGridSpec(
            num_scalar_prefetch=0,
            grid=(N, nc),
            in_specs=[
                pl.BlockSpec((1, TC, HW), lambda b, c: (b, c, 0)),
                pl.BlockSpec(memory_space=pltpu.MemorySpace.SMEM),
            ],
            out_specs=pl.BlockSpec((1, 1, HW), lambda b, c: (b, 0, 0)),
            scratch_shapes=[
                pltpu.VMEM((SL, HW), x.dtype),       # running channel max
                pltpu.VMEM((1, L), jnp.float32),     # flat zero-padded max map
            ],
        ),
        compiler_params=pltpu.CompilerParams(
            dimension_semantics=("parallel", "arbitrary"),
            vmem_limit_bytes=48 * 1024 * 1024,
        ),
        cost_estimate=cost,
    )(x_flat, w_flat)

    return out.reshape(N, 1, H, W)


def _reference(x, weight):
    """Pure-JAX reference of the PyTorch forward (for validation)."""
    K = weight.shape[0]
    p = (K - 1) // 2
    max_out = jnp.max(x, axis=1, keepdims=True)                # (N,1,H,W)
    w4 = weight.reshape(1, 1, K, K)                            # OIHW
    y = lax.conv_general_dilated(
        max_out, w4, window_strides=(1, 1), padding=((p, p), (p, p)),
        dimension_numbers=("NCHW", "OIHW", "NCHW"))
    return jax.nn.sigmoid(y)


if __name__ == "__main__":
    key = jax.random.PRNGKey(0)
    kx, kw, kx2 = jax.random.split(key, 3)

    K = 7
    # Deterministic conv weight init (uniform, kaiming-like bound for fan_in=K*K).
    bound = 1.0 / jnp.sqrt(jnp.float32(K * K))
    weight = jax.random.uniform(kw, (K, K), minval=-bound, maxval=bound,
                                dtype=jnp.float32)

    # Main small test (single channel tile path).
    N, C, H, W = 2, 4, 16, 16
    x = jax.random.normal(kx, (N, C, H, W), dtype=jnp.float32)
    out = spatial_attention(x, weight, kernel_size=K)
    out = jax.block_until_ready(out)
    ref = _reference(x, weight)
    assert out.shape == (N, 1, H, W)
    assert jnp.allclose(out, ref, atol=1e-5, rtol=1e-5), "mismatch vs reference"

    # Second test: tiny block budget to exercise the channel-tiled grid,
    # the multi-group sublane fold and the gated partial-tile mask.
    N2, C2 = 2, 20
    x2 = jax.random.normal(kx2, (N2, C2, H, W), dtype=jnp.float32)
    out2 = spatial_attention(x2, weight, kernel_size=K,
                             block_target_bytes=16 * 1024)
    out2 = jax.block_until_ready(out2)
    ref2 = _reference(x2, weight)
    assert out2.shape == (N2, 1, H, W)
    assert jnp.allclose(out2, ref2, atol=1e-5, rtol=1e-5), "mismatch vs reference (tiled)"

    print("KERNEL_OK")
</pallas_src>

<mosaic_0001>
module attributes {stable_mosaic.version = 11 : i64} {
  func.func @_spatial_attention_kernel(%arg0: i32, %arg1: i32, %arg2: memref<1x4x256xf32, #tpu.memory_space<vmem>>, %arg3: memref<49xf32, #tpu.memory_space<smem>>, %arg4: memref<1x1x256xf32, #tpu.memory_space<vmem>>, %arg5: memref<4x256xf32, #tpu.memory_space<vmem>>, %arg6: memref<1x512xf32, #tpu.memory_space<vmem>>) attributes {dimension_semantics = [#tpu.dimension_semantics<parallel>, #tpu.dimension_semantics<arbitrary>], iteration_bounds = array<i64: 2, 1>, scalar_prefetch = 0 : i64, scratch_operands = 2 : i64, tpu.core_type = #tpu.core_type<tc>, window_params = [{transform_indices = @transform_0, window_bounds = array<i64: 1, 4, 256>}, {transform_indices = @transform_1, window_bounds = array<i64: 49>}, {transform_indices = @transform_2, window_bounds = array<i64: 1, 1, 256>}]} {
    %c0_i32 = arith.constant 0 : i32
    %0 = arith.cmpi eq, %arg1, %c0_i32 : i32
    %1 = arith.extui %0 : i1 to i32
    %c0_i32_0 = arith.constant 0 : i32
    %2 = arith.cmpi ne, %1, %c0_i32_0 : i32
    scf.if %2 {
      %cst = arith.constant 0xFF800000 : f32
      %11 = vector.broadcast %cst : f32 to vector<4x256xf32>
      %c0_9 = arith.constant 0 : index
      %c0_10 = arith.constant 0 : index
      %12 = vector.load %arg5[%c0_9, %c0_10] : memref<4x256xf32, #tpu.memory_space<vmem>>, vector<4x256xf32>
      tpu.vector_store %arg5[%c0_9, %c0_10], %11 {strides = array<i32>} : memref<4x256xf32, #tpu.memory_space<vmem>>, vector<4x256xf32>,
    } else {
    }
    %c0 = arith.constant 0 : index
    %c0_1 = arith.constant 0 : index
    %c0_2 = arith.constant 0 : index
    %3 = vector.load %arg2[%c0, %c0_1, %c0_2] : memref<1x4x256xf32, #tpu.memory_space<vmem>>, vector<1x4x256xf32>
    %4 = vector.shape_cast %3 : vector<1x4x256xf32> to vector<4x256xf32>
    %c0_3 = arith.constant 0 : index
    %c0_4 = arith.constant 0 : index
    %5 = vector.load %arg5[%c0_3, %c0_4] : memref<4x256xf32, #tpu.memory_space<vmem>>, vector<4x256xf32>
    %6 = arith.maximumf %5, %4 : vector<4x256xf32>
    %c0_5 = arith.constant 0 : index
    %c0_6 = arith.constant 0 : index
    %7 = vector.load %arg5[%c0_5, %c0_6] : memref<4x256xf32, #tpu.memory_space<vmem>>, vector<4x256xf32>
    tpu.vector_store %arg5[%c0_5, %c0_6], %6 {strides = array<i32>} : memref<4x256xf32, #tpu.memory_space<vmem>>, vector<4x256xf32>,
    %c0_i32_7 = arith.constant 0 : i32
    %8 = arith.cmpi eq, %arg1, %c0_i32_7 : i32
    %9 = arith.extui %8 : i1 to i32
    %c0_i32_8 = arith.constant 0 : i32
    %10 = arith.cmpi ne, %9, %c0_i32_8 : i32
    scf.if %10 {
      %cst = arith.constant 0.000000e+00 : f32
      %11 = vector.broadcast %cst : f32 to vector<1x512xf32>
      %c0_9 = arith.constant 0 : index
      %c0_10 = arith.constant 0 : index
      %12 = vector.load %arg6[%c0_9, %c0_10] : memref<1x512xf32, #tpu.memory_space<vmem>>, vector<1x512xf32>
      tpu.vector_store %arg6[%c0_9, %c0_10], %11 {strides = array<i32>} : memref<1x512xf32, #tpu.memory_space<vmem>>, vector<1x512xf32>,
      %c0_11 = arith.constant 0 : index
      %c0_12 = arith.constant 0 : index
      %13 = vector.load %arg5[%c0_11, %c0_12] : memref<4x256xf32, #tpu.memory_space<vmem>>, vector<4x256xf32>
      %cst_13 = arith.constant dense<0xFF800000> : vector<256xf32>
      %14 = vector.multi_reduction <maximumf>, %13, %cst_13 [0] : vector<4x256xf32> to vector<256xf32>
      %15 = vector.shape_cast %14 : vector<256xf32> to vector<1x256xf32>
      %c0_14 = arith.constant 0 : index
      %c128 = arith.constant 128 : index
      %16 = vector.load %arg6[%c0_14, %c128] : memref<1x512xf32, #tpu.memory_space<vmem>>, vector<1x256xf32>
      tpu.vector_store %arg6[%c0_14, %c128], %15 {strides = array<i32>} : memref<1x512xf32, #tpu.memory_space<vmem>>, vector<1x256xf32>,
      %c0_15 = arith.constant 0 : index
      %c77 = arith.constant 77 : index
      %17 = vector.load %arg6[%c0_15, %c77] : memref<1x512xf32, #tpu.memory_space<vmem>>, vector<1x262xf32>
      %18 = vector.extract_strided_slice %17 {offsets = [0, 0], sizes = [1, 256], strides = [1, 1]} : vector<1x262xf32> to vector<1x256xf32>
      %c0_16 = arith.constant 0 : index
      %19 = memref.load %arg3[%c0_16] : memref<49xf32, #tpu.memory_space<smem>>
      %20 = vector.broadcast %19 : f32 to vector<1x256xf32>
      %21 = arith.mulf %20, %18 : vector<1x256xf32>
      %22 = vector.extract_strided_slice %17 {offsets = [0, 1], sizes = [1, 256], strides = [1, 1]} : vector<1x262xf32> to vector<1x256xf32>
      %c1 = arith.constant 1 : index
      %23 = memref.load %arg3[%c1] : memref<49xf32, #tpu.memory_space<smem>>
      %24 = vector.broadcast %23 : f32 to vector<1x256xf32>
      %25 = arith.mulf %24, %22 : vector<1x256xf32>
      %26 = vector.extract_strided_slice %17 {offsets = [0, 2], sizes = [1, 256], strides = [1, 1]} : vector<1x262xf32> to vector<1x256xf32>
      %c2 = arith.constant 2 : index
      %27 = memref.load %arg3[%c2] : memref<49xf32, #tpu.memory_space<smem>>
      %28 = vector.broadcast %27 : f32 to vector<1x256xf32>
      %29 = arith.mulf %28, %26 : vector<1x256xf32>
      %30 = vector.extract_strided_slice %17 {offsets = [0, 3], sizes = [1, 256], strides = [1, 1]} : vector<1x262xf32> to vector<1x256xf32>
      %c3 = arith.constant 3 : index
      %31 = memref.load %arg3[%c3] : memref<49xf32, #tpu.memory_space<smem>>
      %32 = vector.broadcast %31 : f32 to vector<1x256xf32>
      %33 = arith.mulf %32, %30 : vector<1x256xf32>
      %34 = vector.extract_strided_slice %17 {offsets = [0, 4], sizes = [1, 256], strides = [1, 1]} : vector<1x262xf32> to vector<1x256xf32>
      %c4 = arith.constant 4 : index
      %35 = memref.load %arg3[%c4] : memref<49xf32, #tpu.memory_space<smem>>
      %36 = vector.broadcast %35 : f32 to vector<1x256xf32>
      %37 = arith.mulf %36, %34 : vector<1x256xf32>
      %38 = vector.extract_strided_slice %17 {offsets = [0, 5], sizes = [1, 256], strides = [1, 1]} : vector<1x262xf32> to vector<1x256xf32>
      %c5 = arith.constant 5 : index
      %39 = memref.load %arg3[%c5] : memref<49xf32, #tpu.memory_space<smem>>
      %40 = vector.broadcast %39 : f32 to vector<1x256xf32>
      %41 = arith.mulf %40, %38 : vector<1x256xf32>
      %42 = vector.extract_strided_slice %17 {offsets = [0, 6], sizes = [1, 256], strides = [1, 1]} : vector<1x262xf32> to vector<1x256xf32>
      %c6 = arith.constant 6 : index
      %43 = memref.load %arg3[%c6] : memref<49xf32, #tpu.memory_space<smem>>
      %44 = vector.broadcast %43 : f32 to vector<1x256xf32>
      %45 = arith.mulf %44, %42 : vector<1x256xf32>
      %c0_17 = arith.constant 0 : index
      %c93 = arith.constant 93 : index
      %46 = vector.load %arg6[%c0_17, %c93] : memref<1x512xf32, #tpu.memory_space<vmem>>, vector<1x262xf32>
      %47 = vector.extract_strided_slice %46 {offsets = [0, 0], sizes = [1, 256], strides = [1, 1]} : vector<1x262xf32> to vector<1x256xf32>
      %c7 = arith.constant 7 : index
      %48 = memref.load %arg3[%c7] : memref<49xf32, #tpu.memory_space<smem>>
      %49 = vector.broadcast %48 : f32 to vector<1x256xf32>
      %50 = arith.mulf %49, %47 : vector<1x256xf32>
      %51 = arith.addf %21, %50 : vector<1x256xf32>
      %52 = vector.extract_strided_slice %46 {offsets = [0, 1], sizes = [1, 256], strides = [1, 1]} : vector<1x262xf32> to vector<1x256xf32>
      %c8 = arith.constant 8 : index
      %53 = memref.load %arg3[%c8] : memref<49xf32, #tpu.memory_space<smem>>
      %54 = vector.broadcast %53 : f32 to vector<1x256xf32>
      %55 = arith.mulf %54, %52 : vector<1x256xf32>
      %56 = arith.addf %25, %55 : vector<1x256xf32>
      %57 = vector.extract_strided_slice %46 {offsets = [0, 2], sizes = [1, 256], strides = [1, 1]} : vector<1x262xf32> to vector<1x256xf32>
      %c9 = arith.constant 9 : index
      %58 = memref.load %arg3[%c9] : memref<49xf32, #tpu.memory_space<smem>>
      %59 = vector.broadcast %58 : f32 to vector<1x256xf32>
      %60 = arith.mulf %59, %57 : vector<1x256xf32>
      %61 = arith.addf %29, %60 : vector<1x256xf32>
      %62 = vector.extract_strided_slice %46 {offsets = [0, 3], sizes = [1, 256], strides = [1, 1]} : vector<1x262xf32> to vector<1x256xf32>
      %c10 = arith.constant 10 : index
      %63 = memref.load %arg3[%c10] : memref<49xf32, #tpu.memory_space<smem>>
      %64 = vector.broadcast %63 : f32 to vector<1x256xf32>
      %65 = arith.mulf %64, %62 : vector<1x256xf32>
      %66 = arith.addf %33, %65 : vector<1x256xf32>
      %67 = vector.extract_strided_slice %46 {offsets = [0, 4], sizes = [1, 256], strides = [1, 1]} : vector<1x262xf32> to vector<1x256xf32>
      %c11 = arith.constant 11 : index
      %68 = memref.load %arg3[%c11] : memref<49xf32, #tpu.memory_space<smem>>
      %69 = vector.broadcast %68 : f32 to vector<1x256xf32>
      %70 = arith.mulf %69, %67 : vector<1x256xf32>
      %71 = arith.addf %37, %70 : vector<1x256xf32>
      %72 = vector.extract_strided_slice %46 {offsets = [0, 5], sizes = [1, 256], strides = [1, 1]} : vector<1x262xf32> to vector<1x256xf32>
      %c12 = arith.constant 12 : index
      %73 = memref.load %arg3[%c12] : memref<49xf32, #tpu.memory_space<smem>>
      %74 = vector.broadcast %73 : f32 to vector<1x256xf32>
      %75 = arith.mulf %74, %72 : vector<1x256xf32>
      %76 = arith.addf %41, %75 : vector<1x256xf32>
      %77 = vector.extract_strided_slice %46 {offsets = [0, 6], sizes = [1, 256], strides = [1, 1]} : vector<1x262xf32> to vector<1x256xf32>
      %c13 = arith.constant 13 : index
      %78 = memref.load %arg3[%c13] : memref<49xf32, #tpu.memory_space<smem>>
      %79 = vector.broadcast %78 : f32 to vector<1x256xf32>
      %80 = arith.mulf %79, %77 : vector<1x256xf32>
      %81 = arith.addf %45, %80 : vector<1x256xf32>
      %c0_18 = arith.constant 0 : index
      %c109 = arith.constant 109 : index
      %82 = vector.load %arg6[%c0_18, %c109] : memref<1x512xf32, #tpu.memory_space<vmem>>, vector<1x262xf32>
      %83 = vector.extract_strided_slice %82 {offsets = [0, 0], sizes = [1, 256], strides = [1, 1]} : vector<1x262xf32> to vector<1x256xf32>
      %c14 = arith.constant 14 : index
      %84 = memref.load %arg3[%c14] : memref<49xf32, #tpu.memory_space<smem>>
      %85 = vector.broadcast %84 : f32 to vector<1x256xf32>
      %86 = arith.mulf %85, %83 : vector<1x256xf32>
      %87 = arith.addf %51, %86 : vector<1x256xf32>
      %88 = vector.extract_strided_slice %82 {offsets = [0, 1], sizes = [1, 256], strides = [1, 1]} : vector<1x262xf32> to vector<1x256xf32>
      %c15 = arith.constant 15 : index
      %89 = memref.load %arg3[%c15] : memref<49xf32, #tpu.memory_space<smem>>
      %90 = vector.broadcast %89 : f32 to vector<1x256xf32>
      %91 = arith.mulf %90, %88 : vector<1x256xf32>
      %92 = arith.addf %56, %91 : vector<1x256xf32>
      %93 = vector.extract_strided_slice %82 {offsets = [0, 2], sizes = [1, 256], strides = [1, 1]} : vector<1x262xf32> to vector<1x256xf32>
      %c16 = arith.constant 16 : index
      %94 = memref.load %arg3[%c16] : memref<49xf32, #tpu.memory_space<smem>>
      %95 = vector.broadcast %94 : f32 to vector<1x256xf32>
      %96 = arith.mulf %95, %93 : vector<1x256xf32>
      %97 = arith.addf %61, %96 : vector<1x256xf32>
      %98 = vector.extract_strided_slice %82 {offsets = [0, 3], sizes = [1, 256], strides = [1, 1]} : vector<1x262xf32> to vector<1x256xf32>
      %c17 = arith.constant 17 : index
      %99 = memref.load %arg3[%c17] : memref<49xf32, #tpu.memory_space<smem>>
      %100 = vector.broadcast %99 : f32 to vector<1x256xf32>
      %101 = arith.mulf %100, %98 : vector<1x256xf32>
      %102 = arith.addf %66, %101 : vector<1x256xf32>
      %103 = vector.extract_strided_slice %82 {offsets = [0, 4], sizes = [1, 256], strides = [1, 1]} : vector<1x262xf32> to vector<1x256xf32>
      %c18 = arith.constant 18 : index
      %104 = memref.load %arg3[%c18] : memref<49xf32, #tpu.memory_space<smem>>
      %105 = vector.broadcast %104 : f32 to vector<1x256xf32>
      %106 = arith.mulf %105, %103 : vector<1x256xf32>
      %107 = arith.addf %71, %106 : vector<1x256xf32>
      %108 = vector.extract_strided_slice %82 {offsets = [0, 5], sizes = [1, 256], strides = [1, 1]} : vector<1x262xf32> to vector<1x256xf32>
      %c19 = arith.constant 19 : index
      %109 = memref.load %arg3[%c19] : memref<49xf32, #tpu.memory_space<smem>>
      %110 = vector.broadcast %109 : f32 to vector<1x256xf32>
      %111 = arith.mulf %110, %108 : vector<1x256xf32>
      %112 = arith.addf %76, %111 : vector<1x256xf32>
      %113 = vector.extract_strided_slice %82 {offsets = [0, 6], sizes = [1, 256], strides = [1, 1]} : vector<1x262xf32> to vector<1x256xf32>
      %c20 = arith.constant 20 : index
      %114 = memref.load %arg3[%c20] : memref<49xf32, #tpu.memory_space<smem>>
      %115 = vector.broadcast %114 : f32 to vector<1x256xf32>
      %116 = arith.mulf %115, %113 : vector<1x256xf32>
      %117 = arith.addf %81, %116 : vector<1x256xf32>
      %c0_19 = arith.constant 0 : index
      %c125 = arith.constant 125 : index
      %118 = vector.load %arg6[%c0_19, %c125] : memref<1x512xf32, #tpu.memory_space<vmem>>, vector<1x262xf32>
      %119 = vector.extract_strided_slice %118 {offsets = [0, 0], sizes = [1, 256], strides = [1, 1]} : vector<1x262xf32> to vector<1x256xf32>
      %c21 = arith.constant 21 : index
      %120 = memref.load %arg3[%c21] : memref<49xf32, #tpu.memory_space<smem>>
      %121 = vector.broadcast %120 : f32 to vector<1x256xf32>
      %122 = arith.mulf %121, %119 : vector<1x256xf32>
      %123 = arith.addf %87, %122 : vector<1x256xf32>
      %124 = vector.extract_strided_slice %118 {offsets = [0, 1], sizes = [1, 256], strides = [1, 1]} : vector<1x262xf32> to vector<1x256xf32>
      %c22 = arith.constant 22 : index
      %125 = memref.load %arg3[%c22] : memref<49xf32, #tpu.memory_space<smem>>
      %126 = vector.broadcast %125 : f32 to vector<1x256xf32>
      %127 = arith.mulf %126, %124 : vector<1x256xf32>
      %128 = arith.addf %92, %127 : vector<1x256xf32>
      %129 = vector.extract_strided_slice %118 {offsets = [0, 2], sizes = [1, 256], strides = [1, 1]} : vector<1x262xf32> to vector<1x256xf32>
      %c23 = arith.constant 23 : index
      %130 = memref.load %arg3[%c23] : memref<49xf32, #tpu.memory_space<smem>>
      %131 = vector.broadcast %130 : f32 to vector<1x256xf32>
      %132 = arith.mulf %131, %129 : vector<1x256xf32>
      %133 = arith.addf %97, %132 : vector<1x256xf32>
      %134 = vector.extract_strided_slice %118 {offsets = [0, 3], sizes = [1, 256], strides = [1, 1]} : vector<1x262xf32> to vector<1x256xf32>
      %c24 = arith.constant 24 : index
      %135 = memref.load %arg3[%c24] : memref<49xf32, #tpu.memory_space<smem>>
      %136 = vector.broadcast %135 : f32 to vector<1x256xf32>
      %137 = arith.mulf %136, %134 : vector<1x256xf32>
      %138 = arith.addf %102, %137 : vector<1x256xf32>
      %139 = vector.extract_strided_slice %118 {offsets = [0, 4], sizes = [1, 256], strides = [1, 1]} : vector<1x262xf32> to vector<1x256xf32>
      %c25 = arith.constant 25 : index
      %140 = memref.load %arg3[%c25] : memref<49xf32, #tpu.memory_space<smem>>
      %141 = vector.broadcast %140 : f32 to vector<1x256xf32>
      %142 = arith.mulf %141, %139 : vector<1x256xf32>
      %143 = arith.addf %107, %142 : vector<1x256xf32>
      %144 = vector.extract_strided_slice %118 {offsets = [0, 5], sizes = [1, 256], strides = [1, 1]} : vector<1x262xf32> to vector<1x256xf32>
      %c26 = arith.constant 26 : index
      %145 = memref.load %arg3[%c26] : memref<49xf32, #tpu.memory_space<smem>>
      %146 = vector.broadcast %145 : f32 to vector<1x256xf32>
      %147 = arith.mulf %146, %144 : vector<1x256xf32>
      %148 = arith.addf %112, %147 : vector<1x256xf32>
      %149 = vector.extract_strided_slice %118 {offsets = [0, 6], sizes = [1, 256], strides = [1, 1]} : vector<1x262xf32> to vector<1x256xf32>
      %c27 = arith.constant 27 : index
      %150 = memref.load %arg3[%c27] : memref<49xf32, #tpu.memory_space<smem>>
      %151 = vector.broadcast %150 : f32 to vector<1x256xf32>
      %152 = arith.mulf %151, %149 : vector<1x256xf32>
      %153 = arith.addf %117, %152 : vector<1x256xf32>
      %c0_20 = arith.constant 0 : index
      %c141 = arith.constant 141 : index
      %154 = vector.load %arg6[%c0_20, %c141] : memref<1x512xf32, #tpu.memory_space<vmem>>, vector<1x262xf32>
      %155 = vector.extract_strided_slice %154 {offsets = [0, 0], sizes = [1, 256], strides = [1, 1]} : vector<1x262xf32> to vector<1x256xf32>
      %c28 = arith.constant 28 : index
      %156 = memref.load %arg3[%c28] : memref<49xf32, #tpu.memory_space<smem>>
      %157 = vector.broadcast %156 : f32 to vector<1x256xf32>
      %158 = arith.mulf %157, %155 : vector<1x256xf32>
      %159 = arith.addf %123, %158 : vector<1x256xf32>
      %160 = vector.extract_strided_slice %154 {offsets = [0, 1], sizes = [1, 256], strides = [1, 1]} : vector<1x262xf32> to vector<1x256xf32>
      %c29 = arith.constant 29 : index
      %161 = memref.load %arg3[%c29] : memref<49xf32, #tpu.memory_space<smem>>
      %162 = vector.broadcast %161 : f32 to vector<1x256xf32>
      %163 = arith.mulf %162, %160 : vector<1x256xf32>
      %164 = arith.addf %128, %163 : vector<1x256xf32>
      %165 = vector.extract_strided_slice %154 {offsets = [0, 2], sizes = [1, 256], strides = [1, 1]} : vector<1x262xf32> to vector<1x256xf32>
      %c30 = arith.constant 30 : index
      %166 = memref.load %arg3[%c30] : memref<49xf32, #tpu.memory_space<smem>>
      %167 = vector.broadcast %166 : f32 to vector<1x256xf32>
      %168 = arith.mulf %167, %165 : vector<1x256xf32>
      %169 = arith.addf %133, %168 : vector<1x256xf32>
      %170 = vector.extract_strided_slice %154 {offsets = [0, 3], sizes = [1, 256], strides = [1, 1]} : vector<1x262xf32> to vector<1x256xf32>
      %c31 = arith.constant 31 : index
      %171 = memref.load %arg3[%c31] : memref<49xf32, #tpu.memory_space<smem>>
      %172 = vector.broadcast %171 : f32 to vector<1x256xf32>
      %173 = arith.mulf %172, %170 : vector<1x256xf32>
      %174 = arith.addf %138, %173 : vector<1x256xf32>
      %175 = vector.extract_strided_slice %154 {offsets = [0, 4], sizes = [1, 256], strides = [1, 1]} : vector<1x262xf32> to vector<1x256xf32>
      %c32 = arith.constant 32 : index
      %176 = memref.load %arg3[%c32] : memref<49xf32, #tpu.memory_space<smem>>
      %177 = vector.broadcast %176 : f32 to vector<1x256xf32>
      %178 = arith.mulf %177, %175 : vector<1x256xf32>
      %179 = arith.addf %143, %178 : vector<1x256xf32>
      %180 = vector.extract_strided_slice %154 {offsets = [0, 5], sizes = [1, 256], strides = [1, 1]} : vector<1x262xf32> to vector<1x256xf32>
      %c33 = arith.constant 33 : index
      %181 = memref.load %arg3[%c33] : memref<49xf32, #tpu.memory_space<smem>>
      %182 = vector.broadcast %181 : f32 to vector<1x256xf32>
      %183 = arith.mulf %182, %180 : vector<1x256xf32>
      %184 = arith.addf %148, %183 : vector<1x256xf32>
      %185 = vector.extract_strided_slice %154 {offsets = [0, 6], sizes = [1, 256], strides = [1, 1]} : vector<1x262xf32> to vector<1x256xf32>
      %c34 = arith.constant 34 : index
      %186 = memref.load %arg3[%c34] : memref<49xf32, #tpu.memory_space<smem>>
      %187 = vector.broadcast %186 : f32 to vector<1x256xf32>
      %188 = arith.mulf %187, %185 : vector<1x256xf32>
      %189 = arith.addf %153, %188 : vector<1x256xf32>
      %c0_21 = arith.constant 0 : index
      %c157 = arith.constant 157 : index
      %190 = vector.load %arg6[%c0_21, %c157] : memref<1x512xf32, #tpu.memory_space<vmem>>, vector<1x262xf32>
      %191 = vector.extract_strided_slice %190 {offsets = [0, 0], sizes = [1, 256], strides = [1, 1]} : vector<1x262xf32> to vector<1x256xf32>
      %c35 = arith.constant 35 : index
      %192 = memref.load %arg3[%c35] : memref<49xf32, #tpu.memory_space<smem>>
      %193 = vector.broadcast %192 : f32 to vector<1x256xf32>
      %194 = arith.mulf %193, %191 : vector<1x256xf32>
      %195 = arith.addf %159, %194 : vector<1x256xf32>
      %196 = vector.extract_strided_slice %190 {offsets = [0, 1], sizes = [1, 256], strides = [1, 1]} : vector<1x262xf32> to vector<1x256xf32>
      %c36 = arith.constant 36 : index
      %197 = memref.load %arg3[%c36] : memref<49xf32, #tpu.memory_space<smem>>
      %198 = vector.broadcast %197 : f32 to vector<1x256xf32>
      %199 = arith.mulf %198, %196 : vector<1x256xf32>
      %200 = arith.addf %164, %199 : vector<1x256xf32>
      %201 = vector.extract_strided_slice %190 {offsets = [0, 2], sizes = [1, 256], strides = [1, 1]} : vector<1x262xf32> to vector<1x256xf32>
      %c37 = arith.constant 37 : index
      %202 = memref.load %arg3[%c37] : memref<49xf32, #tpu.memory_space<smem>>
      %203 = vector.broadcast %202 : f32 to vector<1x256xf32>
      %204 = arith.mulf %203, %201 : vector<1x256xf32>
      %205 = arith.addf %169, %204 : vector<1x256xf32>
      %206 = vector.extract_strided_slice %190 {offsets = [0, 3], sizes = [1, 256], strides = [1, 1]} : vector<1x262xf32> to vector<1x256xf32>
      %c38 = arith.constant 38 : index
      %207 = memref.load %arg3[%c38] : memref<49xf32, #tpu.memory_space<smem>>
      %208 = vector.broadcast %207 : f32 to vector<1x256xf32>
      %209 = arith.mulf %208, %206 : vector<1x256xf32>
      %210 = arith.addf %174, %209 : vector<1x256xf32>
      %211 = vector.extract_strided_slice %190 {offsets = [0, 4], sizes = [1, 256], strides = [1, 1]} : vector<1x262xf32> to vector<1x256xf32>
      %c39 = arith.constant 39 : index
      %212 = memref.load %arg3[%c39] : memref<49xf32, #tpu.memory_space<smem>>
      %213 = vector.broadcast %212 : f32 to vector<1x256xf32>
      %214 = arith.mulf %213, %211 : vector<1x256xf32>
      %215 = arith.addf %179, %214 : vector<1x256xf32>
      %216 = vector.extract_strided_slice %190 {offsets = [0, 5], sizes = [1, 256], strides = [1, 1]} : vector<1x262xf32> to vector<1x256xf32>
      %c40 = arith.constant 40 : index
      %217 = memref.load %arg3[%c40] : memref<49xf32, #tpu.memory_space<smem>>
      %218 = vector.broadcast %217 : f32 to vector<1x256xf32>
      %219 = arith.mulf %218, %216 : vector<1x256xf32>
      %220 = arith.addf %184, %219 : vector<1x256xf32>
      %221 = vector.extract_strided_slice %190 {offsets = [0, 6], sizes = [1, 256], strides = [1, 1]} : vector<1x262xf32> to vector<1x256xf32>
      %c41 = arith.constant 41 : index
      %222 = memref.load %arg3[%c41] : memref<49xf32, #tpu.memory_space<smem>>
      %223 = vector.broadcast %222 : f32 to vector<1x256xf32>
      %224 = arith.mulf %223, %221 : vector<1x256xf32>
      %225 = arith.addf %189, %224 : vector<1x256xf32>
      %c0_22 = arith.constant 0 : index
      %c173 = arith.constant 173 : index
      %226 = vector.load %arg6[%c0_22, %c173] : memref<1x512xf32, #tpu.memory_space<vmem>>, vector<1x262xf32>
      %227 = vector.extract_strided_slice %226 {offsets = [0, 0], sizes = [1, 256], strides = [1, 1]} : vector<1x262xf32> to vector<1x256xf32>
      %c42 = arith.constant 42 : index
      %228 = memref.load %arg3[%c42] : memref<49xf32, #tpu.memory_space<smem>>
      %229 = vector.broadcast %228 : f32 to vector<1x256xf32>
      %230 = arith.mulf %229, %227 : vector<1x256xf32>
      %231 = arith.addf %195, %230 : vector<1x256xf32>
      %232 = vector.extract_strided_slice %226 {offsets = [0, 1], sizes = [1, 256], strides = [1, 1]} : vector<1x262xf32> to vector<1x256xf32>
      %c43 = arith.constant 43 : index
      %233 = memref.load %arg3[%c43] : memref<49xf32, #tpu.memory_space<smem>>
      %234 = vector.broadcast %233 : f32 to vector<1x256xf32>
      %235 = arith.mulf %234, %232 : vector<1x256xf32>
      %236 = arith.addf %200, %235 : vector<1x256xf32>
      %237 = vector.extract_strided_slice %226 {offsets = [0, 2], sizes = [1, 256], strides = [1, 1]} : vector<1x262xf32> to vector<1x256xf32>
      %c44 = arith.constant 44 : index
      %238 = memref.load %arg3[%c44] : memref<49xf32, #tpu.memory_space<smem>>
      %239 = vector.broadcast %238 : f32 to vector<1x256xf32>
      %240 = arith.mulf %239, %237 : vector<1x256xf32>
      %241 = arith.addf %205, %240 : vector<1x256xf32>
      %242 = vector.extract_strided_slice %226 {offsets = [0, 3], sizes = [1, 256], strides = [1, 1]} : vector<1x262xf32> to vector<1x256xf32>
      %c45 = arith.constant 45 : index
      %243 = memref.load %arg3[%c45] : memref<49xf32, #tpu.memory_space<smem>>
      %244 = vector.broadcast %243 : f32 to vector<1x256xf32>
      %245 = arith.mulf %244, %242 : vector<1x256xf32>
      %246 = arith.addf %210, %245 : vector<1x256xf32>
      %247 = vector.extract_strided_slice %226 {offsets = [0, 4], sizes = [1, 256], strides = [1, 1]} : vector<1x262xf32> to vector<1x256xf32>
      %c46 = arith.constant 46 : index
      %248 = memref.load %arg3[%c46] : memref<49xf32, #tpu.memory_space<smem>>
      %249 = vector.broadcast %248 : f32 to vector<1x256xf32>
      %250 = arith.mulf %249, %247 : vector<1x256xf32>
      %251 = arith.addf %215, %250 : vector<1x256xf32>
      %252 = vector.extract_strided_slice %226 {offsets = [0, 5], sizes = [1, 256], strides = [1, 1]} : vector<1x262xf32> to vector<1x256xf32>
      %c47 = arith.constant 47 : index
      %253 = memref.load %arg3[%c47] : memref<49xf32, #tpu.memory_space<smem>>
      %254 = vector.broadcast %253 : f32 to vector<1x256xf32>
      %255 = arith.mulf %254, %252 : vector<1x256xf32>
      %256 = arith.addf %220, %255 : vector<1x256xf32>
      %257 = vector.extract_strided_slice %226 {offsets = [0, 6], sizes = [1, 256], strides = [1, 1]} : vector<1x262xf32> to vector<1x256xf32>
      %c48 = arith.constant 48 : index
      %258 = memref.load %arg3[%c48] : memref<49xf32, #tpu.memory_space<smem>>
      %259 = vector.broadcast %258 : f32 to vector<1x256xf32>
      %260 = arith.mulf %259, %257 : vector<1x256xf32>
      %261 = arith.addf %225, %260 : vector<1x256xf32>
      %262 = tpu.iota {dimensions = array<i32: 1>} : vector<1x256xi32>
      %c16_i32 = arith.constant 16 : i32
      %c0_i32_23 = arith.constant 0 : i32
      %263 = arith.cmpi eq, %c16_i32, %c0_i32_23 : i32
      %c1_i32 = arith.constant 1 : i32
      %264 = arith.select %263, %c1_i32, %c16_i32 : i32
      %265 = vector.broadcast %264 : i32 to vector<1x256xi32>
      %266 = arith.remsi %262, %265 : vector<1x256xi32>
      %c0_i32_24 = arith.constant 0 : i32
      %267 = vector.broadcast %c0_i32_24 : i32 to vector<1x256xi32>
      %268 = arith.cmpi ne, %266, %267 : vector<1x256xi32>
      %c0_i32_25 = arith.constant 0 : i32
      %269 = vector.broadcast %c0_i32_25 : i32 to vector<1x256xi32>
      %270 = arith.cmpi slt, %266, %269 : vector<1x256xi32>
      %c0_i32_26 = arith.constant 0 : i32
      %271 = arith.cmpi slt, %264, %c0_i32_26 : i32
      %272 = vector.broadcast %271 : i1 to vector<1x256xi1>
      %273 = vector.broadcast %272 : vector<1x256xi1> to vector<1x256xi1>
      %274 = arith.xori %270, %273 : vector<1x256xi1>
      %275 = arith.andi %274, %268 : vector<1x256xi1>
      %276 = vector.broadcast %264 : i32 to vector<1x256xi32>
      %277 = arith.addi %266, %276 : vector<1x256xi32>
      %278 = arith.select %275, %277, %266 : vector<1x256xi1>, vector<1x256xi32>
      %c3_i32 = arith.constant 3 : i32
      %279 = vector.broadcast %c3_i32 : i32 to vector<1x256xi32>
      %280 = arith.cmpi sge, %278, %279 : vector<1x256xi32>
      %c19_i32 = arith.constant 19 : i32
      %281 = vector.broadcast %c19_i32 : i32 to vector<1x256xi32>
      %282 = arith.cmpi slt, %278, %281 : vector<1x256xi32>
      %283 = arith.andi %280, %282 : vector<1x256xi1>
      %cst_27 = arith.constant 0.000000e+00 : f32
      %284 = vector.broadcast %cst_27 : f32 to vector<1x256xf32>
      %285 = arith.select %283, %231, %284 : vector<1x256xi1>, vector<1x256xf32>
      %c2_i32 = arith.constant 2 : i32
      %286 = vector.broadcast %c2_i32 : i32 to vector<1x256xi32>
      %287 = arith.cmpi sge, %278, %286 : vector<1x256xi32>
      %c18_i32 = arith.constant 18 : i32
      %288 = vector.broadcast %c18_i32 : i32 to vector<1x256xi32>
      %289 = arith.cmpi slt, %278, %288 : vector<1x256xi32>
      %290 = arith.andi %287, %289 : vector<1x256xi1>
      %cst_28 = arith.constant 0.000000e+00 : f32
      %291 = vector.broadcast %cst_28 : f32 to vector<1x256xf32>
      %292 = arith.select %290, %236, %291 : vector<1x256xi1>, vector<1x256xf32>
      %c1_i32_29 = arith.constant 1 : i32
      %293 = vector.broadcast %c1_i32_29 : i32 to vector<1x256xi32>
      %294 = arith.cmpi sge, %278, %293 : vector<1x256xi32>
      %c17_i32 = arith.constant 17 : i32
      %295 = vector.broadcast %c17_i32 : i32 to vector<1x256xi32>
      %296 = arith.cmpi slt, %278, %295 : vector<1x256xi32>
      %297 = arith.andi %294, %296 : vector<1x256xi1>
      %cst_30 = arith.constant 0.000000e+00 : f32
      %298 = vector.broadcast %cst_30 : f32 to vector<1x256xf32>
      %299 = arith.select %297, %241, %298 : vector<1x256xi1>, vector<1x256xf32>
      %c-1_i32 = arith.constant -1 : i32
      %300 = vector.broadcast %c-1_i32 : i32 to vector<1x256xi32>
      %301 = arith.cmpi sge, %278, %300 : vector<1x256xi32>
      %c15_i32 = arith.constant 15 : i32
      %302 = vector.broadcast %c15_i32 : i32 to vector<1x256xi32>
      %303 = arith.cmpi slt, %278, %302 : vector<1x256xi32>
      %304 = arith.andi %301, %303 : vector<1x256xi1>
      %cst_31 = arith.constant 0.000000e+00 : f32
      %305 = vector.broadcast %cst_31 : f32 to vector<1x256xf32>
      %306 = arith.select %304, %251, %305 : vector<1x256xi1>, vector<1x256xf32>
      %c-2_i32 = arith.constant -2 : i32
      %307 = vector.broadcast %c-2_i32 : i32 to vector<1x256xi32>
      %308 = arith.cmpi sge, %278, %307 : vector<1x256xi32>
      %c14_i32 = arith.constant 14 : i32
      %309 = vector.broadcast %c14_i32 : i32 to vector<1x256xi32>
      %310 = arith.cmpi slt, %278, %309 : vector<1x256xi32>
      %311 = arith.andi %308, %310 : vector<1x256xi1>
      %cst_32 = arith.constant 0.000000e+00 : f32
      %312 = vector.broadcast %cst_32 : f32 to vector<1x256xf32>
      %313 = arith.select %311, %256, %312 : vector<1x256xi1>, vector<1x256xf32>
      %c-3_i32 = arith.constant -3 : i32
      %314 = vector.broadcast %c-3_i32 : i32 to vector<1x256xi32>
      %315 = arith.cmpi sge, %278, %314 : vector<1x256xi32>
      %c13_i32 = arith.constant 13 : i32
      %316 = vector.broadcast %c13_i32 : i32 to vector<1x256xi32>
      %317 = arith.cmpi slt, %278, %316 : vector<1x256xi32>
      %318 = arith.andi %315, %317 : vector<1x256xi1>
      %cst_33 = arith.constant 0.000000e+00 : f32
      %319 = vector.broadcast %cst_33 : f32 to vector<1x256xf32>
      %320 = arith.select %318, %261, %319 : vector<1x256xi1>, vector<1x256xf32>
      %321 = arith.addf %285, %292 : vector<1x256xf32>
      %322 = arith.addf %299, %246 : vector<1x256xf32>
      %323 = arith.addf %306, %313 : vector<1x256xf32>
      %324 = arith.addf %321, %322 : vector<1x256xf32>
      %325 = arith.addf %323, %320 : vector<1x256xf32>
      %326 = arith.addf %324, %325 : vector<1x256xf32>
      %327 = arith.negf %326 : vector<1x256xf32>
      %328 = math.exp %327 : vector<1x256xf32>
      %cst_34 = arith.constant 1.000000e+00 : f32
      %329 = vector.broadcast %cst_34 : f32 to vector<1x256xf32>
      %330 = arith.addf %329, %328 : vector<1x256xf32>
      %331 = arith.divf %329, %330 : vector<1x256xf32>
      %c0_35 = arith.constant 0 : index
      %c0_36 = arith.constant 0 : index
      %c0_37 = arith.constant 0 : index
      %332 = vector.load %arg4[%c0_35, %c0_36, %c0_37] : memref<1x1x256xf32, #tpu.memory_space<vmem>>, vector<1x1x256xf32>
      %333 = vector.shape_cast %332 : vector<1x1x256xf32> to vector<1x256xf32>
      %334 = vector.shape_cast %331 : vector<1x256xf32> to vector<1x1x256xf32>
      tpu.vector_store %arg4[%c0_35, %c0_36, %c0_37], %334 {strides = array<i32>} : memref<1x1x256xf32, #tpu.memory_space<vmem>>, vector<1x1x256xf32>,
    } else {
    }
    return
  }
  func.func @transform_0(%arg0: i32, %arg1: i32) -> (i32, i32, i32) {
    %c0_i32 = arith.constant 0 : i32
    %c0_i32_0 = arith.constant 0 : i32
    return %arg0, %arg1, %c0_i32 : i32, i32, i32
  }
  func.func @transform_1(%arg0: i32, %arg1: i32) -> i32 {
    %c0_i32 = arith.constant 0 : i32
    %c0_i32_0 = arith.constant 0 : i32
    return %c0_i32 : i32
  }
  func.func @transform_2(%arg0: i32, %arg1: i32) -> (i32, i32, i32) {
    %c0_i32 = arith.constant 0 : i32
    %c0_i32_0 = arith.constant 0 : i32
    %c0_i32_1 = arith.constant 0 : i32
    return %arg0, %c0_i32, %c0_i32_0 : i32, i32, i32
  }
}

</mosaic_0001>

<llo_original>
// kernel: tpu_custom_call.1
$region0: #{tpu_custom_call.1}
  #allocation0 [shape = 'u32[]', space=smem, size = 0x4, offset = 0x4, fixed_abs, tag = 'smem constant byte address 0x4 - core index']
  #allocation1 [shape = 'u32[72,128]{1,0:T(1,128)}', space=vmem, size = 0x9000, scoped, tag = 'internal scratch']
  #allocation2 [shape = 'f32[4,256]{1,0:T(4,128)}', space=vmem, size = 0x1000, scoped, tag = 'scratch operand']
  #allocation3 [shape = 'f32[1,512]{1,0:T(1,128)}', space=vmem, size = 0x800, scoped, tag = 'scratch operand']
  %s0 = inlined_call_operand.hbm [shape: f32[2,4,256], index: 0, kind: input, shape index: {}]
  %s1 = inlined_call_operand.hbm [shape: f32[49], index: 1, kind: input, shape index: {}]
  %s2 = inlined_call_operand.hbm [shape: f32[2,1,256], index: 2, kind: output, shape index: {}]
  %s3 = sld [smem:[#allocation0]]
  $region57: #{tpu_custom_call.1} parent=0
    _
  %s5 = ssub.s32 1, %s3
  %s6 = scalar_select 0, %s5, %s3
  $region1: #{tpu_custom_call.1} parent=0
    #allocation4 [shape = 'u8[8192]{0}', space=vmem, size = 0x2000, scoped, tag = 'input window, operand 0']
    #allocation5 [shape = 's32[2]{0}', space=sflag, size = 0x8, scoped, tag = 'scoped memory for tpu_custom_call.1']
    #allocation6 [shape = 's32[2]{0}', space=sflag, size = 0x8, scoped, tag = 'scoped memory for tpu_custom_call.1']
    #allocation7 [shape = 's32[2]{0}', space=sflag, size = 0x8, scoped, tag = 'scoped memory for tpu_custom_call.1']
    #allocation8 [shape = 'u8[512]{0}', space=smem, size = 0x200, scoped, tag = 'input window, operand 1, single buffered']
    #allocation9 [shape = 'u8[2048]{0}', space=vmem, size = 0x800, scoped, tag = 'output window, operand 0']
    %7 = vsyncpa [#allocation5], 0
    %s8 = scalar_lea.sflag [#allocation5], 1
    %9 = vsyncpa %s8, 0
    %10 = vsyncpa [#allocation7], 0
    %11 = vsyncpa [#allocation6], 0
    %s12 = scalar_lea.sflag [#allocation6], 1
    %13 = vsyncpa %s12, 0
    loop: start=0, step=1, limit=4
    $region2: #{tpu_custom_call.1} parent=1 // loop_pre_header
      _
    $region3: #{tpu_custom_call.1} parent=1 // loop_header
      %s15 = sphi 0, %s19
      %p16 = scmp.ge.s32.totalorder %s15, 4
      %s22 = sphi 0, %s34
      %s23 = sphi 0, %s30
      %s24 = sphi 0, %s22
      %s25 = sphi 0, %s23
      %s26 = sphi 0, %s24
      %s27 = sphi 0, %s25
      %s39 = sphi 0, %s41
      %s42 = sphi 0, %s39
      %s43 = sphi 0, %s42
      %s59 = sphi 0, %s43
      %s63 = sphi 0, %s63
      %s65 = sphi 0, %s63
      %s66 = sphi 0, %s65
      %s80 = sphi 0, %s66
      %s86 = sphi 0, %s88
      %s89 = sphi 0, %s86
      %s90 = sphi 0, %s89
      %s106 = sphi 0, %s90
    $region4: #{tpu_custom_call.1} parent=1 // loop_header_branch
      %18 = sbr.rel (%p16) target = $region8
    $region5: #{tpu_custom_call.1} parent=1 // loop_body
      %s20 = ssub.s32 %s15, 1
      %s21 = ssub.s32 %s15, 2
      %s28 = sadd.s32 1, %s23
      %p29 = scmp.ge.s32.totalorder %s28, 1
      %s30 = scalar_select %p29, 0, %s28
      %s31 = sadd.s32 1, %s22
      %s32 = scalar_select %p29, %s31, %s22
      %p33 = scmp.ge.s32.totalorder %s32, 2
      %s34 = scalar_select %p33, 0, %s32
      %s35 = ssub.s32 %s22, %s34
      %s36 = ssub.s32 %s23, %s30
      %s37 = sor.u32 %s35, %s36
      %p38 = scmp.eq.s32.totalorder %s37, 0
      %s40 = sadd.s32 %s39, 1
      %s41 = scalar_select %p38, %s39, %s40
      %p44 = pneg %p38
      %p45 = scmp.eq.s32.totalorder %s15, 1
      %p46 = por %p44, %p45
      %p47 = scmp.ne.s32.totalorder %s39, %s42
      %p48 = scmp.eq.s32.totalorder %s15, 0
      %p49 = por %p47, %p48
      %p50 = scmp.ne.s32.totalorder %s39, %s42
      %p51 = scmp.eq.s32.totalorder %s20, 1
      %p52 = por %p50, %p51
      %p53 = scmp.ne.s32.totalorder %s42, %s43
      %p54 = scmp.eq.s32.totalorder %s20, 0
      %p55 = por %p53, %p54
      %p56 = scmp.ne.s32.totalorder %s42, %s43
      %p57 = scmp.eq.s32.totalorder %s21, 1
      %p58 = por %p56, %p57
      %p60 = scmp.ne.s32.totalorder %s43, %s59
      %p61 = scmp.eq.s32.totalorder %s21, 0
      %p62 = por %p60, %p61
      %s64 = sadd.s32 %s63, 1
      %p67 = scmp.eq.s32.totalorder %s15, 1
      %p68 = scmp.ne.s32.totalorder %s63, %s65
      %p69 = scmp.eq.s32.totalorder %s15, 0
      %p70 = por %p68, %p69
      %p71 = scmp.ne.s32.totalorder %s63, %s65
      %p72 = scmp.eq.s32.totalorder %s20, 1
      %p73 = por %p71, %p72
      %p74 = scmp.ne.s32.totalorder %s65, %s66
      %p75 = scmp.eq.s32.totalorder %s20, 0
      %p76 = por %p74, %p75
      %p77 = scmp.ne.s32.totalorder %s65, %s66
      %p78 = scmp.eq.s32.totalorder %s21, 1
      %p79 = por %p77, %p78
      %p81 = scmp.ne.s32.totalorder %s66, %s80
      %p82 = scmp.eq.s32.totalorder %s21, 0
      %p83 = por %p81, %p82
      %s84 = ssub.s32 %s22, %s34
      %p85 = scmp.eq.s32.totalorder %s84, 0
      %s87 = sadd.s32 %s86, 1
      %s88 = scalar_select %p85, %s86, %s87
      %p91 = pneg %p85
      %p92 = scmp.eq.s32.totalorder %s15, 1
      %p93 = por %p91, %p92
      %p94 = scmp.ne.s32.totalorder %s86, %s89
      %p95 = scmp.eq.s32.totalorder %s15, 0
      %p96 = por %p94, %p95
      %p97 = scmp.ne.s32.totalorder %s86, %s89
      %p98 = scmp.eq.s32.totalorder %s20, 1
      %p99 = por %p97, %p98
      %p100 = scmp.ne.s32.totalorder %s89, %s90
      %p101 = scmp.eq.s32.totalorder %s20, 0
      %p102 = por %p100, %p101
      %p103 = scmp.ne.s32.totalorder %s89, %s90
      %p104 = scmp.eq.s32.totalorder %s21, 1
      %p105 = por %p103, %p104
      %p107 = scmp.ne.s32.totalorder %s90, %s106
      %p108 = scmp.eq.s32.totalorder %s21, 0
      %p109 = por %p107, %p108
      %p110 = scmp.le.s32.totalorder 1, %s15
      %p111 = scmp.lt.s32.totalorder %s15, 3
      %p112 = pnand %p110, %p111
      %p113 = pneg %p112
      // Predicated region
      $region9: #{tpu_custom_call.1} parent=5 // pred_check
        _
      $region10: #{tpu_custom_call.1} parent=5 // pred_check_branch
        %115 = sbr.rel (%p112) target = $region12
      $region11: #{tpu_custom_call.1} parent=5 // pred_region
        %s116 = ssub.s32 %s15, 1
        // Predicated region
        $region13: #{tpu_custom_call.1} parent=11 // pred_check
          %p117 = pneg %p76
        $region14: #{tpu_custom_call.1} parent=11 // pred_check_branch
          %119 = sbr.rel (%p117) target = $region16
        $region15: #{tpu_custom_call.1} parent=11 // pred_region
          %121 = vsyncadd [#allocation7], 0
          %s123 = sshll.u32 %s1, 4
          %s124 = int_to_ptr.hbm [resolvable:$true] %s123
          %126 = dma.hbm_to_smem %s124, 16, [#allocation8], [#allocation7]
        $region16: #{tpu_custom_call.1} parent=11 // pred_fallthru
          _
      $region12: #{tpu_custom_call.1} parent=5 // pred_fallthru
        _
      %p127 = scmp.lt.s32.totalorder %s15, 2
      // Predicated region
      $region17: #{tpu_custom_call.1} parent=5 // pred_check
        %p128 = pneg %p127
      $region18: #{tpu_custom_call.1} parent=5 // pred_check_branch
        %130 = sbr.rel (%p128) target = $region20
      $region19: #{tpu_custom_call.1} parent=5 // pred_region
        // Predicated region
        $region21: #{tpu_custom_call.1} parent=19 // pred_check
          %p131 = pneg %p49
        $region22: #{tpu_custom_call.1} parent=19 // pred_check_branch
          %133 = sbr.rel (%p131) target = $region24
        $region23: #{tpu_custom_call.1} parent=19 // pred_region
          %s134 = sand.u32 %s39, 1
          %s135 = scalar_lea.sflag [#allocation5], %s134
          %s136 = sand.u32 %s39, 1
          %s137 = smul.addr %s136, 8
          %s138 = scalar_lea.vmem [#allocation4], %s137
          %140 = vsyncadd %s135, 0
          %s141 = smul.addr %s23, 2
          %s142 = smul.addr %s22, 2
          %s143 = sadd.s32 %s141, %s142
          %s144 = smul.addr %s143, 4
          %s145 = scalar_lea.hbm %s0, %s144
          %s147 = sshll.u32 %s145, 4
          %s148 = int_to_ptr.hbm [resolvable:$true] %s147
          %s149 = sshll.u32 %s138, 4
          %s150 = int_to_ptr.vmem [resolvable:$true] %s149
          %152 = dma.hbm_to_vmem [thread:$0]  %s148, 128, %s150, %s135
        $region24: #{tpu_custom_call.1} parent=19 // pred_fallthru
          _
      $region20: #{tpu_custom_call.1} parent=5 // pred_fallthru
        _
      %p153 = scmp.le.s32.totalorder 1, %s15
      %p154 = scmp.lt.s32.totalorder %s15, 3
      %p155 = pnand %p153, %p154
      %p156 = pneg %p155
      // Predicated region
      $region25: #{tpu_custom_call.1} parent=5 // pred_check
        _
      $region26: #{tpu_custom_call.1} parent=5 // pred_check_branch
        %158 = sbr.rel (%p155) target = $region28
      $region27: #{tpu_custom_call.1} parent=5 // pred_region
        %s159 = ssub.s32 %s15, 1
        %s160 = sand.u32 %s42, 1
        %s161 = scalar_lea.sflag [#allocation5], %s160
        %s162 = sand.u32 %s42, 1
        %s163 = smul.addr %s162, 8
        %s164 = scalar_lea.vmem [#allocation4], %s163
        // Predicated region
        $region29: #{tpu_custom_call.1} parent=27 // pred_check
          %p165 = pneg %p55
        $region30: #{tpu_custom_call.1} parent=27 // pred_check_branch
          %167 = sbr.rel (%p165) target = $region32
        $region31: #{tpu_custom_call.1} parent=27 // pred_region
          %169 = dma.done %s161, 128
        $region32: #{tpu_custom_call.1} parent=27 // pred_fallthru
          _
        // Predicated region
        $region33: #{tpu_custom_call.1} parent=27 // pred_check
          %p170 = pneg %p76
        $region34: #{tpu_custom_call.1} parent=27 // pred_check_branch
          %172 = sbr.rel (%p170) target = $region36
        $region35: #{tpu_custom_call.1} parent=27 // pred_region
          %174 = dma.done [#allocation7], 16
        $region36: #{tpu_custom_call.1} parent=27 // pred_fallthru
          _
        %175 = sfence
        %s176 = sand.u32 %s42, 1
        %s177 = scalar_lea.sflag [#allocation5], %s176
        %s178 = sand.u32 %s42, 1
        %s179 = smul.addr %s178, 8
        %s180 = scalar_lea.vmem [#allocation4], %s179
        %p181 = pneg %p55
        %p182 = pneg %p52
        %p183 = pneg %p76
        %p184 = pneg %p73
        %p185 = pneg %p102
        %p186 = pneg %p99
        %s187 = sand.u32 %s89, 1
        %s188 = scalar_lea.sflag [#allocation6], %s187
        %s189 = sand.u32 %s89, 1
        %s190 = smul.addr %s189, 2
        %s191 = scalar_lea.vmem [#allocation9], %s190
        %p192 = scmp.eq.s32.totalorder %s25, 0
        // Predicated region
        $region37: #{tpu_custom_call.1} parent=27 // pred_check
          %p193 = pneg %p192
        $region38: #{tpu_custom_call.1} parent=27 // pred_check_branch
          %195 = sbr.rel (%p193) target = $region40
        $region39: #{tpu_custom_call.1} parent=27 // pred_region
          %196 = vst [vmem:[#allocation2] sm:$0xff] -inf
        $region40: #{tpu_custom_call.1} parent=27 // pred_fallthru
          _
        %v197 = vld [vmem:[%s164] sm:$0xff]
        %v198 = vld [vmem:[#allocation2] sm:$0xff]
        %v199 = vmax.f32 %v198, %v197
        %200 = vst [vmem:[#allocation2] sm:$0xff] %v199
        // Predicated region
        $region41: #{tpu_custom_call.1} parent=27 // pred_check
          %p201 = pneg %p192
        $region42: #{tpu_custom_call.1} parent=27 // pred_check_branch
          %203 = sbr.rel (%p201) target = $region44
        $region43: #{tpu_custom_call.1} parent=27 // pred_region
          %v204 = vlaneseq
          %vm205 = vcmp.ge.s32.totalorder %v204, 0
          %vm206 = vcmp.lt.s32.totalorder %v204, 512
          %vm207 = vmand %vm205, %vm206
          %208 = vst.msk [vmem:[#allocation3] sm:$0xf] %vm207, 0.0
          %v209 = vld [vmem:[#allocation2] sm:$0xff]
          %211 = vst [vmem:[#allocation1] ss:$2 sm:$0xff] %v209
          %v212 = vld.sshfl [vmem:[#allocation1] sm:$0xff pattern:$0x75316420]
          %v213 = vld.sshfl [vmem:[#allocation1 + $0x8] sm:$0xff pattern:$0x75316420]
          %vm216 = vcmask 1043456
          %v217 = vsel %vm216, %v212, -inf
          %v218 = vrot.slane %v217, 4
          %v219 = vmax.f32 %v217, %v218
          %v220 = vrot.slane %v219, 2
          %v221 = vmax.f32 %v219, %v220
          %v222 = vrot.slane %v221, 1
          %v223 = vmax.f32 %v221, %v222
          %v224 = vsel %vm216, %v213, -inf
          %v225 = vrot.slane %v224, 4
          %v226 = vmax.f32 %v224, %v225
          %v227 = vrot.slane %v226, 2
          %v228 = vmax.f32 %v226, %v227
          %v229 = vrot.slane %v228, 1
          %v230 = vmax.f32 %v228, %v229
          %v233 = vrot.slane %v230, 7
          %vm234 = vcmask 1040384
          %v235 = vsel %vm234, %v223, %v233
          %vm237 = vcmp.lt.s32.totalorder %v204, 256
          %vm238 = vmand %vm205, %vm237
          %239 = vst.msk [vmem:[#allocation3 + $0x1] sm:$0x3] %vm238, %v235
          %v240 = vld [vmem:[#allocation3] sm:$0x7]
          %s241 = sld [smem:[#allocation8]]
          %v242 = vstv %s241
          %v243 = vmul.f32 %v242, %v240
          %s244 = sld [smem:[#allocation8 + $0x1]]
          %v245 = vstv %s244
          %v246 = vmul.f32 %v245, %v240
          %s247 = sld [smem:[#allocation8 + $0x2]]
          %v248 = vstv %s247
          %v249 = vmul.f32 %v248, %v240
          %s250 = sld [smem:[#allocation8 + $0x3]]
          %v251 = vstv %s250
          %v252 = vmul.f32 %v251, %v240
          %s253 = sld [smem:[#allocation8 + $0x4]]
          %v254 = vstv %s253
          %v255 = vmul.f32 %v254, %v240
          %s256 = sld [smem:[#allocation8 + $0x5]]
          %v257 = vstv %s256
          %v258 = vmul.f32 %v257, %v240
          %s259 = sld [smem:[#allocation8 + $0x6]]
          %v260 = vstv %s259
          %v261 = vmul.f32 %v260, %v240
          %s262 = sld [smem:[#allocation8 + $0x7]]
          %v263 = vstv %s262
          %v264 = vmul.f32 %v263, %v240
          %266 = vrot.lane.b32.xlu0 %v264, 112
          %v267 = vpop.permute.xlu0 %266
          %v268 = vrot.slane %v267, 1
          %vm269 = vcmask 916480
          %v270 = vsel %vm269, %v267, %v268
          %v272 = vadd.f32 %v243, %v270
          %s273 = sld [smem:[#allocation8 + $0x8]]
          %v274 = vstv %s273
          %v275 = vmul.f32 %v274, %v240
          %277 = vrot.lane.b32.xlu0 %v275, 112
          %v278 = vpop.permute.xlu0 %277
          %v279 = vrot.slane %v278, 1
          %v280 = vsel %vm269, %v278, %v279
          %v282 = vadd.f32 %v246, %v280
          %s283 = sld [smem:[#allocation8 + $0x9]]
          %v284 = vstv %s283
          %v285 = vmul.f32 %v284, %v240
          %287 = vrot.lane.b32.xlu0 %v285, 112
          %v288 = vpop.permute.xlu0 %287
          %v289 = vrot.slane %v288, 1
          %v290 = vsel %vm269, %v288, %v289
          %v292 = vadd.f32 %v249, %v290
          %s293 = sld [smem:[#allocation8 + $0xa]]
          %v294 = vstv %s293
          %v295 = vmul.f32 %v294, %v240
          %297 = vrot.lane.b32.xlu0 %v295, 112
          %v298 = vpop.permute.xlu0 %297
          %v299 = vrot.slane %v298, 1
          %v300 = vsel %vm269, %v298, %v299
          %v302 = vadd.f32 %v252, %v300
          %s303 = sld [smem:[#allocation8 + $0xb]]
          %v304 = vstv %s303
          %v305 = vmul.f32 %v304, %v240
          %307 = vrot.lane.b32.xlu0 %v305, 112
          %v308 = vpop.permute.xlu0 %307
          %v309 = vrot.slane %v308, 1
          %v310 = vsel %vm269, %v308, %v309
          %v312 = vadd.f32 %v255, %v310
          %s313 = sld [smem:[#allocation8 + $0xc]]
          %v314 = vstv %s313
          %v315 = vmul.f32 %v314, %v240
          %317 = vrot.lane.b32.xlu0 %v315, 112
          %v318 = vpop.permute.xlu0 %317
          %v319 = vrot.slane %v318, 1
          %v320 = vsel %vm269, %v318, %v319
          %v322 = vadd.f32 %v258, %v320
          %s323 = sld [smem:[#allocation8 + $0xd]]
          %v324 = vstv %s323
          %v325 = vmul.f32 %v324, %v240
          %327 = vrot.lane.b32.xlu0 %v325, 112
          %v328 = vpop.permute.xlu0 %327
          %v329 = vrot.slane %v328, 1
          %v330 = vsel %vm269, %v328, %v329
          %v332 = vadd.f32 %v261, %v330
          %s333 = sld [smem:[#allocation8 + $0xe]]
          %v334 = vstv %s333
          %v335 = vmul.f32 %v334, %v240
          %337 = vrot.lane.b32.xlu0 %v335, 96
          %v338 = vpop.permute.xlu0 %337
          %v339 = vrot.slane %v338, 1
          %vm340 = vcmask 785408
          %v341 = vsel %vm340, %v338, %v339
          %v343 = vadd.f32 %v272, %v341
          %s344 = sld [smem:[#allocation8 + $0xf]]
          %v345 = vstv %s344
          %v346 = vmul.f32 %v345, %v240
          %348 = vrot.lane.b32.xlu0 %v346, 96
          %v349 = vpop.permute.xlu0 %348
          %v350 = vrot.slane %v349, 1
          %v351 = vsel %vm340, %v349, %v350
          %v353 = vadd.f32 %v282, %v351
          %s354 = sld [smem:[#allocation8 + $0x10]]
          %v355 = vstv %s354
          %v356 = vmul.f32 %v355, %v240
          %358 = vrot.lane.b32.xlu0 %v356, 96
          %v359 = vpop.permute.xlu0 %358
          %v360 = vrot.slane %v359, 1
          %v361 = vsel %vm340, %v359, %v360
          %v363 = vadd.f32 %v292, %v361
          %s364 = sld [smem:[#allocation8 + $0x11]]
          %v365 = vstv %s364
          %v366 = vmul.f32 %v365, %v240
          %368 = vrot.lane.b32.xlu0 %v366, 96
          %v369 = vpop.permute.xlu0 %368
          %v370 = vrot.slane %v369, 1
          %v371 = vsel %vm340, %v369, %v370
          %v373 = vadd.f32 %v302, %v371
          %s374 = sld [smem:[#allocation8 + $0x12]]
          %v375 = vstv %s374
          %v376 = vmul.f32 %v375, %v240
          %378 = vrot.lane.b32.xlu0 %v376, 96
          %v379 = vpop.permute.xlu0 %378
          %v380 = vrot.slane %v379, 1
          %v381 = vsel %vm340, %v379, %v380
          %v383 = vadd.f32 %v312, %v381
          %s384 = sld [smem:[#allocation8 + $0x13]]
          %v385 = vstv %s384
          %v386 = vmul.f32 %v385, %v240
          %388 = vrot.lane.b32.xlu0 %v386, 96
          %v389 = vpop.permute.xlu0 %388
          %v390 = vrot.slane %v389, 1
          %v391 = vsel %vm340, %v389, %v390
          %v393 = vadd.f32 %v322, %v391
          %s394 = sld [smem:[#allocation8 + $0x14]]
          %v395 = vstv %s394
          %v396 = vmul.f32 %v395, %v240
          %398 = vrot.lane.b32.xlu0 %v396, 96
          %v399 = vpop.permute.xlu0 %398
          %v400 = vrot.slane %v399, 1
          %v401 = vsel %vm340, %v399, %v400
          %v403 = vadd.f32 %v332, %v401
          %v404 = vld [vmem:[#allocation3] sm:$0xf]
          %s405 = sld [smem:[#allocation8 + $0x15]]
          %v406 = vstv %s405
          %v407 = vmul.f32 %v406, %v404
          %409 = vrot.lane.b32.xlu0 %v407, 80
          %v410 = vpop.permute.xlu0 %409
          %v411 = vrot.slane %v410, 1
          %vm412 = vcmask 654336
          %v413 = vsel %vm412, %v410, %v411
          %v415 = vadd.f32 %v343, %v413
          %s416 = sld [smem:[#allocation8 + $0x16]]
          %v417 = vstv %s416
          %v418 = vmul.f32 %v417, %v404
          %420 = vrot.lane.b32.xlu0 %v418, 80
          %v421 = vpop.permute.xlu0 %420
          %v422 = vrot.slane %v421, 1
          %v423 = vsel %vm412, %v421, %v422
          %v425 = vadd.f32 %v353, %v423
          %s426 = sld [smem:[#allocation8 + $0x17]]
          %v427 = vstv %s426
          %v428 = vmul.f32 %v427, %v404
          %430 = vrot.lane.b32.xlu0 %v428, 80
          %v431 = vpop.permute.xlu0 %430
          %v432 = vrot.slane %v431, 1
          %v433 = vsel %vm412, %v431, %v432
          %v435 = vadd.f32 %v363, %v433
          %s436 = sld [smem:[#allocation8 + $0x18]]
          %v437 = vstv %s436
          %v439 = vrot.slane %v404, 1
          %v441 = vmul.f32 %v437, %v439
          %443 = vrot.lane.b32.xlu0 %v441, 80
          %v444 = vpop.permute.xlu0 %443
          %v445 = vrot.slane %v444, 7
          %v446 = vsel %vm412, %v445, %v444
          %v448 = vadd.f32 %v373, %v446
          %s449 = sld [smem:[#allocation8 + $0x19]]
          %v450 = vstv %s449
          %451 = vrot.lane.b32.xlu0 %v404, 127
          %v452 = vpop.permute.xlu0 %451
          %v453 = vrot.slane %v452, 1
          %v454 = vrot.slane %v452, 2
          %vm455 = vcmask 1039360
          %v456 = vsel %vm455, %v453, %v454
          %v458 = vmul.f32 %v450, %v456
          %460 = vrot.lane.b32.xlu0 %v458, 81
          %v461 = vpop.permute.xlu0 %460
          %v462 = vrot.slane %v461, 7
          %vm463 = vcmask 662528
          %v464 = vsel %vm463, %v462, %v461
          %v466 = vadd.f32 %v383, %v464
          %s467 = sld [smem:[#allocation8 + $0x1a]]
          %v468 = vstv %s467
          %469 = vrot.lane.b32.xlu0 %v404, 126
          %v470 = vpop.permute.xlu0 %469
          %v471 = vrot.slane %v470, 1
          %v472 = vrot.slane %v470, 2
          %vm473 = vcmask 1031168
          %v474 = vsel %vm473, %v471, %v472
          %v476 = vmul.f32 %v468, %v474
          %478 = vrot.lane.b32.xlu0 %v476, 82
          %v479 = vpop.permute.xlu0 %478
          %v480 = vrot.slane %v479, 7
          %vm481 = vcmask 670720
          %v482 = vsel %vm481, %v480, %v479
          %v484 = vadd.f32 %v393, %v482
          %s485 = sld [smem:[#allocation8 + $0x1b]]
          %v486 = vstv %s485
          %487 = vrot.lane.b32.xlu0 %v404, 125
          %v488 = vpop.permute.xlu0 %487
          %v489 = vrot.slane %v488, 1
          %v490 = vrot.slane %v488, 2
          %vm491 = vcmask 1022976
          %v492 = vsel %vm491, %v489, %v490
          %v494 = vmul.f32 %v486, %v492
          %496 = vrot.lane.b32.xlu0 %v494, 83
          %v497 = vpop.permute.xlu0 %496
          %v498 = vrot.slane %v497, 7
          %vm499 = vcmask 678912
          %v500 = vsel %vm499, %v498, %v497
          %v502 = vadd.f32 %v403, %v500
          %v503 = vld [vmem:[#allocation3 + $0x1] sm:$0x7]
          %s504 = sld [smem:[#allocation8 + $0x1c]]
          %v505 = vstv %s504
          %v506 = vmul.f32 %v505, %v503
          %508 = vrot.lane.b32.xlu0 %v506, 64
          %v509 = vpop.permute.xlu0 %508
          %v510 = vrot.slane %v509, 7
          %vm511 = vcmask 523264
          %v512 = vsel %vm511, %v510, %v509
          %v514 = vadd.f32 %v415, %v512
          %s515 = sld [smem:[#allocation8 + $0x1d]]
          %v516 = vstv %s515
          %v517 = vmul.f32 %v516, %v503
          %519 = vrot.lane.b32.xlu0 %v517, 64
          %v520 = vpop.permute.xlu0 %519
          %v521 = vrot.slane %v520, 7
          %v522 = vsel %vm511, %v521, %v520
          %v524 = vadd.f32 %v425, %v522
          %s525 = sld [smem:[#allocation8 + $0x1e]]
          %v526 = vstv %s525
          %v527 = vmul.f32 %v526, %v503
          %529 = vrot.lane.b32.xlu0 %v527, 64
          %v530 = vpop.permute.xlu0 %529
          %v531 = vrot.slane %v530, 7
          %v532 = vsel %vm511, %v531, %v530
          %v534 = vadd.f32 %v435, %v532
          %s535 = sld [smem:[#allocation8 + $0x1f]]
          %v536 = vstv %s535
          %v537 = vmul.f32 %v536, %v503
          %539 = vrot.lane.b32.xlu0 %v537, 64
          %v540 = vpop.permute.xlu0 %539
          %v541 = vrot.slane %v540, 7
          %v542 = vsel %vm511, %v541, %v540
          %v544 = vadd.f32 %v448, %v542
          %s545 = sld [smem:[#allocation8 + $0x20]]
          %v546 = vstv %s545
          %v547 = vmul.f32 %v546, %v503
          %549 = vrot.lane.b32.xlu0 %v547, 64
          %v550 = vpop.permute.xlu0 %549
          %v551 = vrot.slane %v550, 7
          %v552 = vsel %vm511, %v551, %v550
          %v554 = vadd.f32 %v466, %v552
          %s555 = sld [smem:[#allocation8 + $0x21]]
          %v556 = vstv %s555
          %v557 = vmul.f32 %v556, %v503
          %559 = vrot.lane.b32.xlu0 %v557, 64
          %v560 = vpop.permute.xlu0 %559
          %v561 = vrot.slane %v560, 7
          %v562 = vsel %vm511, %v561, %v560
          %v564 = vadd.f32 %v484, %v562
          %s565 = sld [smem:[#allocation8 + $0x22]]
          %v566 = vstv %s565
          %v567 = vmul.f32 %v566, %v503
          %569 = vrot.lane.b32.xlu0 %v567, 64
          %v570 = vpop.permute.xlu0 %569
          %v571 = vrot.slane %v570, 7
          %v572 = vsel %vm511, %v571, %v570
          %v574 = vadd.f32 %v502, %v572
          %s575 = sld [smem:[#allocation8 + $0x23]]
          %v576 = vstv %s575
          %v577 = vmul.f32 %v576, %v503
          %579 = vrot.lane.b32.xlu0 %v577, 48
          %v580 = vpop.permute.xlu0 %579
          %v581 = vrot.slane %v580, 7
          %vm582 = vcmask 392192
          %v583 = vsel %vm582, %v581, %v580
          %v585 = vadd.f32 %v514, %v583
          %s586 = sld [smem:[#allocation8 + $0x24]]
          %v587 = vstv %s586
          %v588 = vmul.f32 %v587, %v503
          %590 = vrot.lane.b32.xlu0 %v588, 48
          %v591 = vpop.permute.xlu0 %590
          %v592 = vrot.slane %v591, 7
          %v593 = vsel %vm582, %v592, %v591
          %v595 = vadd.f32 %v524, %v593
          %s596 = sld [smem:[#allocation8 + $0x25]]
          %v597 = vstv %s596
          %v598 = vmul.f32 %v597, %v503
          %600 = vrot.lane.b32.xlu0 %v598, 48
          %v601 = vpop.permute.xlu0 %600
          %v602 = vrot.slane %v601, 7
          %v603 = vsel %vm582, %v602, %v601
          %v605 = vadd.f32 %v534, %v603
          %s606 = sld [smem:[#allocation8 + $0x26]]
          %v607 = vstv %s606
          %v608 = vmul.f32 %v607, %v503
          %610 = vrot.lane.b32.xlu0 %v608, 48
          %v611 = vpop.permute.xlu0 %610
          %v612 = vrot.slane %v611, 7
          %v613 = vsel %vm582, %v612, %v611
          %v615 = vadd.f32 %v544, %v613
          %s616 = sld [smem:[#allocation8 + $0x27]]
          %v617 = vstv %s616
          %v618 = vmul.f32 %v617, %v503
          %620 = vrot.lane.b32.xlu0 %v618, 48
          %v621 = vpop.permute.xlu0 %620
          %v622 = vrot.slane %v621, 7
          %v623 = vsel %vm582, %v622, %v621
          %v625 = vadd.f32 %v554, %v623
          %s626 = sld [smem:[#allocation8 + $0x28]]
          %v627 = vstv %s626
          %v628 = vmul.f32 %v627, %v503
          %630 = vrot.lane.b32.xlu0 %v628, 48
          %v631 = vpop.permute.xlu0 %630
          %v632 = vrot.slane %v631, 7
          %v633 = vsel %vm582, %v632, %v631
          %v635 = vadd.f32 %v564, %v633
          %s636 = sld [smem:[#allocation8 + $0x29]]
          %v637 = vstv %s636
          %v638 = vmul.f32 %v637, %v503
          %640 = vrot.lane.b32.xlu0 %v638, 48
          %v641 = vpop.permute.xlu0 %640
          %v642 = vrot.slane %v641, 7
          %v643 = vsel %vm582, %v642, %v641
          %v645 = vadd.f32 %v574, %v643
          %s646 = sld [smem:[#allocation8 + $0x2a]]
          %v647 = vstv %s646
          %v648 = vmul.f32 %v647, %v503
          %650 = vrot.lane.b32.xlu0 %v648, 32
          %v651 = vpop.permute.xlu0 %650
          %v652 = vrot.slane %v651, 7
          %vm653 = vcmask 261120
          %v654 = vsel %vm653, %v652, %v651
          %v656 = vadd.f32 %v585, %v654
          %s657 = sld [smem:[#allocation8 + $0x2b]]
          %v658 = vstv %s657
          %v659 = vmul.f32 %v658, %v503
          %661 = vrot.lane.b32.xlu0 %v659, 32
          %v662 = vpop.permute.xlu0 %661
          %v663 = vrot.slane %v662, 7
          %v664 = vsel %vm653, %v663, %v662
          %v666 = vadd.f32 %v595, %v664
          %s667 = sld [smem:[#allocation8 + $0x2c]]
          %v668 = vstv %s667
          %v669 = vmul.f32 %v668, %v503
          %671 = vrot.lane.b32.xlu0 %v669, 32
          %v672 = vpop.permute.xlu0 %671
          %v673 = vrot.slane %v672, 7
          %v674 = vsel %vm653, %v673, %v672
          %v676 = vadd.f32 %v605, %v674
          %s677 = sld [smem:[#allocation8 + $0x2d]]
          %v678 = vstv %s677
          %v679 = vmul.f32 %v678, %v503
          %681 = vrot.lane.b32.xlu0 %v679, 32
          %v682 = vpop.permute.xlu0 %681
          %v683 = vrot.slane %v682, 7
          %v684 = vsel %vm653, %v683, %v682
          %v686 = vadd.f32 %v615, %v684
          %s687 = sld [smem:[#allocation8 + $0x2e]]
          %v688 = vstv %s687
          %v689 = vmul.f32 %v688, %v503
          %691 = vrot.lane.b32.xlu0 %v689, 32
          %v692 = vpop.permute.xlu0 %691
          %v693 = vrot.slane %v692, 7
          %v694 = vsel %vm653, %v693, %v692
          %v696 = vadd.f32 %v625, %v694
          %s697 = sld [smem:[#allocation8 + $0x2f]]
          %v698 = vstv %s697
          %v699 = vmul.f32 %v698, %v503
          %701 = vrot.lane.b32.xlu0 %v699, 32
          %v702 = vpop.permute.xlu0 %701
          %v703 = vrot.slane %v702, 7
          %v704 = vsel %vm653, %v703, %v702
          %v706 = vadd.f32 %v635, %v704
          %s707 = sld [smem:[#allocation8 + $0x30]]
          %v708 = vstv %s707
          %v709 = vmul.f32 %v708, %v503
          %711 = vrot.lane.b32.xlu0 %v709, 32
          %v712 = vpop.permute.xlu0 %711
          %v713 = vrot.slane %v712, 7
          %v714 = vsel %vm653, %v713, %v712
          %v716 = vadd.f32 %v645, %v714
          %v717 = vlaneseq
          %v718 = vand.u32 %v717, 127
          %v719 = vadd.s32 %v718, 128
          %vm720 = vcmp.lt.s32.totalorder %v718, 0
          %v721 = vsub.s32 0, %v718
          %v722 = vsel %vm720, %v721, %v718
          %v723 = vshrl.u32 %v722, 4
          %v724 = vand.u32 %v722, 15
          %v725 = vsub.s32 0, %v724
          %v726 = vsel %vm720, %v725, %v724
          %vm727 = vcmp.lt.s32.totalorder %v719, 0
          %v728 = vsub.s32 0, %v719
          %v729 = vsel %vm727, %v728, %v719
          %v730 = vshrl.u32 %v729, 4
          %v731 = vand.u32 %v729, 15
          %v732 = vsub.s32 0, %v731
          %v733 = vsel %vm727, %v732, %v731
          %vm734 = vcmp.ne.s32.totalorder %v726, 0
          %vm735 = vcmp.ne.s32.totalorder %v733, 0
          %vm736 = vcmp.lt.s32.totalorder %v726, 0
          %vm737 = vcmp.lt.s32.totalorder %v733, 0
          %vm738 = vmand %vm736, %vm734
          %vm739 = vmand %vm737, %vm735
          %v740 = vadd.s32 %v726, 16
          %v741 = vadd.s32 %v733, 16
          %v742 = vsel %vm738, %v740, %v726
          %v743 = vsel %vm739, %v741, %v733
          %vm744 = vcmp.ge.s32.totalorder %v742, 3
          %vm745 = vcmp.ge.s32.totalorder %v743, 3
          %vm746 = vcmp.lt.s32.totalorder %v742, 19
          %vm747 = vcmp.lt.s32.totalorder %v743, 19
          %vm748 = vmand %vm744, %vm746
          %vm749 = vmand %vm745, %vm747
          %v751 = vperm.slane %v656, 0
          %v752 = vperm.slane %v656, 1
          %v753 = vperm.slane %v656, 2
          %754 = vrot.lane.b32.xlu0 %v751, 51
          %v755 = vpop.permute.xlu0 %754
          %756 = vrot.lane.b32.xlu0 %v752, 51
          %v757 = vpop.permute.xlu0 %756
          %758 = vrot.lane.b32.xlu0 %v753, 51
          %v759 = vpop.permute.xlu0 %758
          %vm760 = vcmask 416768
          %v761 = vsel %vm760, %v755, %v757
          %v762 = vsel %vm760, %v757, %v759
          %v765 = vsel %vm748, %v761, 0.0
          %v766 = vsel %vm749, %v762, 0.0
          %vm767 = vcmp.ge.s32.totalorder %v742, 2
          %vm768 = vcmp.ge.s32.totalorder %v743, 2
          %vm769 = vcmp.lt.s32.totalorder %v742, 18
          %vm770 = vcmp.lt.s32.totalorder %v743, 18
          %vm771 = vmand %vm767, %vm769
          %vm772 = vmand %vm768, %vm770
          %v774 = vperm.slane %v666, 0
          %v775 = vperm.slane %v666, 1
          %v776 = vperm.slane %v666, 2
          %777 = vrot.lane.b32.xlu0 %v774, 50
          %v778 = vpop.permute.xlu0 %777
          %779 = vrot.lane.b32.xlu0 %v775, 50
          %v780 = vpop.permute.xlu0 %779
          %781 = vrot.lane.b32.xlu0 %v776, 50
          %v782 = vpop.permute.xlu0 %781
          %vm783 = vcmask 408576
          %v784 = vsel %vm783, %v778, %v780
          %v785 = vsel %vm783, %v780, %v782
          %v788 = vsel %vm771, %v784, 0.0
          %v789 = vsel %vm772, %v785, 0.0
          %vm790 = vcmp.ge.s32.totalorder %v742, 1
          %vm791 = vcmp.ge.s32.totalorder %v743, 1
          %vm792 = vcmp.lt.s32.totalorder %v742, 17
          %vm793 = vcmp.lt.s32.totalorder %v743, 17
          %vm794 = vmand %vm790, %vm792
          %vm795 = vmand %vm791, %vm793
          %v797 = vperm.slane %v676, 0
          %v798 = vperm.slane %v676, 1
          %v799 = vperm.slane %v676, 2
          %800 = vrot.lane.b32.xlu0 %v797, 49
          %v801 = vpop.permute.xlu0 %800
          %802 = vrot.lane.b32.xlu0 %v798, 49
          %v803 = vpop.permute.xlu0 %802
          %804 = vrot.lane.b32.xlu0 %v799, 49
          %v805 = vpop.permute.xlu0 %804
          %vm806 = vcmask 400384
          %v807 = vsel %vm806, %v801, %v803
          %v808 = vsel %vm806, %v803, %v805
          %v811 = vsel %vm794, %v807, 0.0
          %v812 = vsel %vm795, %v808, 0.0
          %vm813 = vcmp.ge.s32.totalorder %v742, 4294967295
          %vm814 = vcmp.ge.s32.totalorder %v743, 4294967295
          %vm815 = vcmp.lt.s32.totalorder %v742, 15
          %vm816 = vcmp.lt.s32.totalorder %v743, 15
          %vm817 = vmand %vm813, %vm815
          %vm818 = vmand %vm814, %vm816
          %v820 = vperm.slane %v696, 0
          %v821 = vperm.slane %v696, 1
          %v822 = vperm.slane %v696, 2
          %823 = vrot.lane.b32.xlu0 %v820, 47
          %v824 = vpop.permute.xlu0 %823
          %825 = vrot.lane.b32.xlu0 %v821, 47
          %v826 = vpop.permute.xlu0 %825
          %827 = vrot.lane.b32.xlu0 %v822, 47
          %v828 = vpop.permute.xlu0 %827
          %vm829 = vcmask 384000
          %v830 = vsel %vm829, %v824, %v826
          %v831 = vsel %vm829, %v826, %v828
          %v834 = vsel %vm817, %v830, 0.0
          %v835 = vsel %vm818, %v831, 0.0
          %vm836 = vcmp.ge.s32.totalorder %v742, 4294967294
          %vm837 = vcmp.ge.s32.totalorder %v743, 4294967294
          %vm838 = vcmp.lt.s32.totalorder %v742, 14
          %vm839 = vcmp.lt.s32.totalorder %v743, 14
          %vm840 = vmand %vm836, %vm838
          %vm841 = vmand %vm837, %vm839
          %v843 = vperm.slane %v706, 0
          %v844 = vperm.slane %v706, 1
          %v845 = vperm.slane %v706, 2
          %846 = vrot.lane.b32.xlu0 %v843, 46
          %v847 = vpop.permute.xlu0 %846
          %848 = vrot.lane.b32.xlu0 %v844, 46
          %v849 = vpop.permute.xlu0 %848
          %850 = vrot.lane.b32.xlu0 %v845, 46
          %v851 = vpop.permute.xlu0 %850
          %vm852 = vcmask 375808
          %v853 = vsel %vm852, %v847, %v849
          %v854 = vsel %vm852, %v849, %v851
          %v857 = vsel %vm840, %v853, 0.0
          %v858 = vsel %vm841, %v854, 0.0
          %vm859 = vcmp.ge.s32.totalorder %v742, 4294967293
          %vm860 = vcmp.ge.s32.totalorder %v743, 4294967293
          %vm861 = vcmp.lt.s32.totalorder %v742, 13
          %vm862 = vcmp.lt.s32.totalorder %v743, 13
          %vm863 = vmand %vm859, %vm861
          %vm864 = vmand %vm860, %vm862
          %v866 = vperm.slane %v716, 0
          %v867 = vperm.slane %v716, 1
          %v868 = vperm.slane %v716, 2
          %869 = vrot.lane.b32.xlu0 %v866, 45
          %v870 = vpop.permute.xlu0 %869
          %871 = vrot.lane.b32.xlu0 %v867, 45
          %v872 = vpop.permute.xlu0 %871
          %873 = vrot.lane.b32.xlu0 %v868, 45
          %v874 = vpop.permute.xlu0 %873
          %vm875 = vcmask 367616
          %v876 = vsel %vm875, %v870, %v872
          %v877 = vsel %vm875, %v872, %v874
          %v880 = vsel %vm863, %v876, 0.0
          %v881 = vsel %vm864, %v877, 0.0
          %v882 = vadd.f32 %v765, %v788
          %v883 = vadd.f32 %v766, %v789
          %v885 = vperm.slane %v686, 0
          %v886 = vperm.slane %v686, 1
          %v887 = vperm.slane %v686, 2
          %888 = vrot.lane.b32.xlu0 %v885, 48
          %v889 = vpop.permute.xlu0 %888
          %890 = vrot.lane.b32.xlu0 %v886, 48
          %v891 = vpop.permute.xlu0 %890
          %892 = vrot.lane.b32.xlu0 %v887, 48
          %v893 = vpop.permute.xlu0 %892
          %v894 = vsel %vm582, %v889, %v891
          %v895 = vsel %vm582, %v891, %v893
          %v898 = vadd.f32 %v811, %v894
          %v899 = vadd.f32 %v812, %v895
          %v900 = vadd.f32 %v834, %v857
          %v901 = vadd.f32 %v835, %v858
          %v902 = vadd.f32 %v882, %v898
          %v903 = vadd.f32 %v883, %v899
          %v904 = vadd.f32 %v900, %v880
          %v905 = vadd.f32 %v901, %v881
          %v906 = vadd.f32 %v902, %v904
          %v907 = vadd.f32 %v903, %v905
          %v908 = vxor.u32 %v906, 2147483648
          %v909 = vxor.u32 %v907, 2147483648
          %v910 = vmul.f32 %v908, 1.442695
          %v911 = vpow.pop %v910
          %v912 = vmul.f32 %v909, 1.442695
          %v913 = vpow.pop %v912
          %v914 = vadd.f32 %v911, 1.0
          %v915 = vadd.f32 %v913, 1.0
          %v916 = vrcp.pop %v914
          %v917 = vmul.f32 %v914, %v916
          %v918 = vsub.f32 1.0, %v917
          %v919 = vmul.f32 %v916, %v918
          %v920 = vadd.f32 %v916, %v919
          %vm921 = vweird.f32 %v914
          %vm922 = vweird.f32 %v916
          %vm923 = vmor %vm921, %vm922
          %v924 = vsel %vm923, %v916, %v920
          %v925 = vand.u32 2147483647, %v914
          %vm926 = vcmp.eq.f32.partialorder %v925, 8.507059e+37
          %v927 = vand.u32 %v914, 2147483648
          %v928 = vor.u32 1.1754944e-38, %v927
          %v929 = vsel %vm926, %v928, %v924
          %v930 = vmul.f32 1.0, %v929
          %v931 = vrcp.pop %v915
          %v932 = vmul.f32 %v915, %v931
          %v933 = vsub.f32 1.0, %v932
          %v934 = vmul.f32 %v931, %v933
          %v935 = vadd.f32 %v931, %v934
          %vm936 = vweird.f32 %v915
          %vm937 = vweird.f32 %v931
          %vm938 = vmor %vm936, %vm937
          %v939 = vsel %vm938, %v931, %v935
          %v940 = vand.u32 2147483647, %v915
          %vm941 = vcmp.eq.f32.partialorder %v940, 8.507059e+37
          %v942 = vand.u32 %v915, 2147483648
          %v943 = vor.u32 1.1754944e-38, %v942
          %v944 = vsel %vm941, %v943, %v939
          %v945 = vmul.f32 1.0, %v944
          %v948 = vrot.slane %v945, 7
          %v949 = vsel %vm234, %v930, %v948
          %951 = vst.msk [vmem:[%s191] sm:$0x3] %vm238, %v949
        $region44: #{tpu_custom_call.1} parent=27 // pred_fallthru
          _
        %s952 = sand.u32 %s89, 1
        %s953 = scalar_lea.sflag [#allocation6], %s952
        %s954 = sand.u32 %s89, 1
        %s955 = smul.addr %s954, 2
        %s956 = scalar_lea.vmem [#allocation9], %s955
        // Predicated region
        $region45: #{tpu_custom_call.1} parent=27 // pred_check
          %p957 = pneg %p99
        $region46: #{tpu_custom_call.1} parent=27 // pred_check_branch
          %959 = sbr.rel (%p957) target = $region48
        $region47: #{tpu_custom_call.1} parent=27 // pred_region
          %961 = vsyncadd %s953, 0
          %s962 = smul.addr %s24, 2
          %s963 = scalar_lea.hbm %s2, %s962
          %s965 = sshll.u32 %s956, 4
          %s966 = int_to_ptr.vmem [resolvable:$true] %s965
          %s967 = sshll.u32 %s963, 4
          %s968 = int_to_ptr.hbm [resolvable:$true] %s967
          %970 = dma.vmem_to_hbm [thread:$0]  %s966, 32, %s968, %s953
        $region48: #{tpu_custom_call.1} parent=27 // pred_fallthru
          _
      $region28: #{tpu_custom_call.1} parent=5 // pred_fallthru
        _
      %p971 = scmp.le.s32.totalorder 2, %s15
      // Predicated region
      $region49: #{tpu_custom_call.1} parent=5 // pred_check
        %p972 = pneg %p971
      $region50: #{tpu_custom_call.1} parent=5 // pred_check_branch
        %974 = sbr.rel (%p972) target = $region52
      $region51: #{tpu_custom_call.1} parent=5 // pred_region
        %s975 = ssub.s32 %s15, 2
        // Predicated region
        $region53: #{tpu_custom_call.1} parent=51 // pred_check
          %p976 = pneg %p105
        $region54: #{tpu_custom_call.1} parent=51 // pred_check_branch
          %978 = sbr.rel (%p976) target = $region56
        $region55: #{tpu_custom_call.1} parent=51 // pred_region
          %s979 = sand.u32 %s90, 1
          %s980 = scalar_lea.sflag [#allocation6], %s979
          %s981 = sand.u32 %s90, 1
          %s982 = smul.addr %s981, 2
          %s983 = scalar_lea.vmem [#allocation9], %s982
          %985 = dma.done %s980, 32
        $region56: #{tpu_custom_call.1} parent=51 // pred_fallthru
          _
      $region52: #{tpu_custom_call.1} parent=5 // pred_fallthru
        _
    $region6: #{tpu_custom_call.1} parent=1 // loop_footer
      %s19 = sadd.s32 1, %s15
    $region7: #{tpu_custom_call.1} parent=1 // loop_footer_branch
      %14 = sbr.rel target = $region3
    $region8: #{tpu_custom_call.1} parent=1 // loop_exit
      _
    %986 = vsyncpa [#allocation5], 1
    %s987 = scalar_lea.sflag [#allocation5], 1
    %988 = vsyncpa %s987, 1
    %989 = vsyncpa [#allocation6], 1
    %s990 = scalar_lea.sflag [#allocation6], 1
    %991 = vsyncpa %s990, 1
    %992 = vsyncpa [#allocation7], 1
    %s993 = scalar_lea.sflag [#allocation7], 1
    %994 = vsyncpa %s993, 1

</llo_original>
